<compile_context>
chip_gen: v7x
topology: tpu7x:2x2x1
jax: 0.10.0
libtpu: 0.0.40
codegen_flags: <defaults>
</compile_context>

<pallas_src>
import functools

import jax
import jax.numpy as jnp
from jax.experimental import pallas as pl
from jax.experimental.pallas import tpu as pltpu


def _round_up(a, b):
    return (a + b - 1) // b * b


def _highdiv_kernel(sc_ref, x_ref, w_ord_ref, w_b_ref, o_ref, *, order, ic, eup_bf16):
    """One (C, thw) channel-major pixel slab; channel matmuls run on the MXU."""
    x_in = x_ref[0]                                   # (C, thw), storage dtype
    xf = x_in.astype(jnp.float32)

    # Fused order-projections: one MXU dot instead of n_ord tiny ones.
    #   (n_ord*IC, C) @ (C, thw) -> (n_ord*IC, thw), f32 accumulation.
    proj = jnp.dot(w_ord_ref[...], x_in, preferred_element_type=jnp.float32)

    t_sum = None
    cnt = 0
    for j in range(order):
        # Initialize from the first projection (no ones() broadcast+mul).
        y_temp = proj[cnt * ic:(cnt + 1) * ic]        # (IC, thw) f32
        cnt += 1
        for _ in range(j):
            y_temp = y_temp * proj[cnt * ic:(cnt + 1) * ic]
            cnt += 1
        # relu, then convb dot in the storage dtype (bf16 x bf16 on the bf16
        # path -> fast MXU; f32 x f32 on the f32 path), f32 accumulation.
        y_j = jnp.maximum(y_temp, 0.0).astype(w_b_ref.dtype)
        z = jnp.dot(w_b_ref[j], y_j, preferred_element_type=jnp.float32)   # (C, thw)
        zh = z * 0.5
        if eup_bf16:
            zh = zh.astype(jnp.bfloat16)              # bf16 EUP (v6e/v7x)
        # sigmoid(z) = 0.5*tanh(z/2) + 0.5 : single EUP op; the affine part is
        # folded into the precomputed scalars below.
        t = jnp.tanh(zh).astype(jnp.float32)
        t_sum = t if t_sum is None else t_sum + t

    half_scale = sc_ref[0]        # gamma / (2*order)
    bias = sc_ref[1]              # 1 + gamma/2
    out = xf * (t_sum * half_scale + bias)
    o_ref[0] = out.astype(o_ref.dtype)


def highdiv_pallas(x_nchw, w_ord, w_b, gamma, *, order, thw_target=8192,
                   eup_bf16=None):
    """x_nchw: (N, C, H, W); w_ord: (n_ord, IC, C); w_b: (order, C, IC); gamma: (1,)."""
    N, C, H, W = x_nchw.shape
    HW = H * W
    n_ord, ic, c_in = w_ord.shape
    assert c_in == C
    assert n_ord == order * (order + 1) // 2

    dtype = x_nchw.dtype
    if eup_bf16 is None:
        # bf16 transcendentals only pay off on v6e/v7x; harmless elsewhere.
        eup_bf16 = (dtype == jnp.bfloat16)

    # Keep IC sublane-aligned (multiple of 8) so the per-order slices of
    # `proj` stay vreg-aligned; zero rows/cols are mathematically inert.
    ic_pad = _round_up(ic, 8)
    if ic_pad != ic:
        w_ord = jnp.pad(w_ord, ((0, 0), (0, ic_pad - ic), (0, 0)))
        w_b = jnp.pad(w_b, ((0, 0), (0, 0), (0, ic_pad - ic)))
        ic = ic_pad

    # Pure reshape, no transpose: NCHW is already channel-major per batch.
    x3 = x_nchw.reshape(N, C, HW)

    # Pixel tiling: lane-dense 128-multiple tiles that exactly cover
    # ceil(HW/128)*128.  Ragged tails are handled by Pallas's partial-block
    # masking (no wrapper pad / slice HBM passes, no over-padding to tile size).
    n_blocks = _round_up(HW, 128) // 128
    target_blocks = max(1, _round_up(max(thw_target, 128), 128) // 128)
    n_tiles = pl.cdiv(n_blocks, target_blocks)
    if N == 1 and n_tiles == 1 and n_blocks >= 2:
        n_tiles = 2                              # keep both v7x TensorCores busy
    if n_tiles == 1:
        thw = HW                                 # full-extent block, no masking
    else:
        thw = pl.cdiv(n_blocks, n_tiles) * 128
    grid = (N, pl.cdiv(HW, thw))

    # Weights are grid-resident (constant index_map) -> DMA'd once; keep them
    # in the storage dtype so the MXU runs bf16 x bf16 on the bf16 path.
    w_ord_cat = w_ord.reshape(n_ord * ic, C).astype(dtype)
    w_b_c = w_b.astype(dtype)

    # Fold gamma, 1/order and the sigmoid affine terms into two f32 scalars:
    #   out = x * (sum_j tanh(z_j/2) * gamma/(2*order) + 1 + gamma/2)
    g = gamma.astype(jnp.float32).reshape(())
    scalars = jnp.stack([g / (2.0 * order), 1.0 + 0.5 * g])

    kernel = functools.partial(_highdiv_kernel, order=order, ic=ic,
                               eup_bf16=eup_bf16)

    out3 = pl.pallas_call(
        kernel,
        out_shape=jax.ShapeDtypeStruct((N, C, HW), dtype),
        grid_spec=pltpu.PrefetchScalarGridSpec(
            num_scalar_prefetch=0,
            grid=grid,
            in_specs=[
                # folded scalars live in SMEM, whole array (shape (2,))
                pl.BlockSpec(memory_space=pltpu.MemorySpace.SMEM),
                # channel-major pixel slab (lane-dense last dim).
                # NOTE: on v7x one may add pipeline_mode=pl.Buffered(3) here
                # if a trace still shows exposed input DMA; default depth kept
                # for portability.
                pl.BlockSpec((1, C, thw), lambda n, t: (n, 0, t)),
                # fused order-conv weights, fully resident
                pl.BlockSpec(w_ord_cat.shape, lambda n, t: (0, 0)),
                # stacked convb weights, fully resident
                pl.BlockSpec(w_b_c.shape, lambda n, t: (0, 0, 0)),
            ],
            out_specs=pl.BlockSpec((1, C, thw), lambda n, t: (n, 0, t)),
        ),
        compiler_params=pltpu.CompilerParams(
            dimension_semantics=("parallel", "parallel"),
            # ~12x block bytes of live VMEM at thw=8192, C=32; 48 MiB fits the
            # v7x 64 MiB part and overrides the 16/32 MiB default scoped limit.
            vmem_limit_bytes=48 * 1024 * 1024),
    )(scalars, x3, w_ord_cat, w_b_c)

    return out3.reshape(N, C, H, W)


def highdiv_reference(x_nchw, w_ord, w_b, gamma, *, order):
    """Pure-JAX reference mirroring the PyTorch forward (kept in NCHW too)."""
    N, C, H, W = x_nchw.shape
    x3 = x_nchw.reshape(N, C, H * W).astype(jnp.float32)
    y_sum = jnp.zeros_like(x3)
    cnt = 0
    for j in range(order):
        y_temp = 1.0
        for _ in range(j + 1):
            proj = jnp.einsum('oc,ncp->nop', w_ord[cnt].astype(jnp.float32), x3)
            y_temp = y_temp * proj
            cnt += 1
        y_j = jnp.maximum(y_temp, 0.0)
        z = jnp.einsum('co,nop->ncp', w_b[j].astype(jnp.float32), y_j)
        y_sum = y_sum + jax.nn.sigmoid(z)
    out = x3 * y_sum / float(order)
    out = out * gamma[0] + x3
    return out.reshape(N, C, H, W)


if __name__ == "__main__":
    # Shapes consistent with the module: in_channels=32 ->
    # inter_channels = 32//8*2 = 8, order=2 -> n_ord = 3.
    N, C, H, W = 2, 32, 16, 16
    ORDER = 2
    IC = C // 8 * 2
    N_ORD = ORDER * (ORDER + 1) // 2

    key = jax.random.PRNGKey(0)
    kx, ko, kb, kx2, kx3, ko3, kb3 = jax.random.split(key, 7)

    x = jax.random.normal(kx, (N, C, H, W), jnp.float32)
    # 1x1 conv weights (out,in,1,1) represented directly as (out,in) matrices.
    w_ord = jax.random.normal(ko, (N_ORD, IC, C), jnp.float32) * (1.0 / jnp.sqrt(C))
    w_b = jax.random.normal(kb, (ORDER, C, IC), jnp.float32) * (1.0 / jnp.sqrt(IC))

    # 1) gamma = 0 (module init): out must equal x (residual only).
    gamma0 = jnp.zeros((1,), jnp.float32)
    out0 = jax.block_until_ready(highdiv_pallas(x, w_ord, w_b, gamma0, order=ORDER))
    ref0 = highdiv_reference(x, w_ord, w_b, gamma0, order=ORDER)
    assert jnp.allclose(out0, ref0, atol=1e-4, rtol=1e-4)

    # 2) non-trivial gate, f32 storage.
    gamma_nz = jnp.array([0.73], jnp.float32)
    out1 = jax.block_until_ready(highdiv_pallas(x, w_ord, w_b, gamma_nz, order=ORDER))
    ref1 = highdiv_reference(x, w_ord, w_b, gamma_nz, order=ORDER)
    assert jnp.allclose(out1, ref1, atol=1e-4, rtol=1e-4)

    # 3) bf16 storage path (halves HBM traffic; MXU bf16 x bf16, f32 accum,
    #    bf16 tanh on the EUP).
    x_bf16 = x.astype(jnp.bfloat16)
    out2 = jax.block_until_ready(
        highdiv_pallas(x_bf16, w_ord, w_b, gamma_nz, order=ORDER))
    assert jnp.allclose(out2.astype(jnp.float32), ref1, atol=1e-1, rtol=1e-1)

    # 4) spatial size with H*W < 128 -> single full-extent tile.
    x_odd = jax.random.normal(kx2, (N, C, 10, 10), jnp.float32)
    out3 = jax.block_until_ready(
        highdiv_pallas(x_odd, w_ord, w_b, gamma_nz, order=ORDER))
    ref3 = highdiv_reference(x_odd, w_ord, w_b, gamma_nz, order=ORDER)
    assert jnp.allclose(out3, ref3, atol=1e-4, rtol=1e-4)

    # 5) ragged multi-tile path: H*W = 169 with thw_target=128 forces two
    #    pixel tiles and a masked partial last block (no wrapper pad/slice).
    x_rag = jax.random.normal(kx3, (N, C, 13, 13), jnp.float32)
    out4 = jax.block_until_ready(
        highdiv_pallas(x_rag, w_ord, w_b, gamma_nz, order=ORDER, thw_target=128))
    ref4 = highdiv_reference(x_rag, w_ord, w_b, gamma_nz, order=ORDER)
    assert jnp.allclose(out4, ref4, atol=1e-4, rtol=1e-4)

    # 6) higher order (order=3, n_ord=6) exercises the multi-product path.
    ORDER3 = 3
    N_ORD3 = ORDER3 * (ORDER3 + 1) // 2
    w_ord3 = jax.random.normal(ko3, (N_ORD3, IC, C), jnp.float32) * (1.0 / jnp.sqrt(C))
    w_b3 = jax.random.normal(kb3, (ORDER3, C, IC), jnp.float32) * (1.0 / jnp.sqrt(IC))
    x6 = jax.random.normal(kx2, (N, C, 12, 12), jnp.float32)
    out5 = jax.block_until_ready(
        highdiv_pallas(x6, w_ord3, w_b3, gamma_nz, order=ORDER3))
    ref5 = highdiv_reference(x6, w_ord3, w_b3, gamma_nz, order=ORDER3)
    assert jnp.allclose(out5, ref5, atol=1e-4, rtol=1e-4)

    print("KERNEL_OK")
</pallas_src>

<mosaic_0001>
module attributes {stable_mosaic.version = 11 : i64} {
  func.func @_highdiv_kernel(%arg0: i32, %arg1: i32, %arg2: memref<2xf32, #tpu.memory_space<smem>>, %arg3: memref<1x32x256xf32, #tpu.memory_space<vmem>>, %arg4: memref<24x32xf32, #tpu.memory_space<vmem>>, %arg5: memref<2x32x8xf32, #tpu.memory_space<vmem>>, %arg6: memref<1x32x256xf32, #tpu.memory_space<vmem>>) attributes {dimension_semantics = [#tpu.dimension_semantics<parallel>, #tpu.dimension_semantics<parallel>], iteration_bounds = array<i64: 2, 1>, scalar_prefetch = 0 : i64, scratch_operands = 0 : i64, tpu.core_type = #tpu.core_type<tc>, window_params = [{transform_indices = @transform_0, window_bounds = array<i64: 2>}, {transform_indices = @transform_1, window_bounds = array<i64: 1, 32, 256>}, {pipeline_mode = #tpu.pipeline_mode<synchronous>, transform_indices = @transform_2, window_bounds = array<i64: 24, 32>}, {pipeline_mode = #tpu.pipeline_mode<synchronous>, transform_indices = @transform_3, window_bounds = array<i64: 2, 32, 8>}, {transform_indices = @transform_4, window_bounds = array<i64: 1, 32, 256>}]} {
    %c0 = arith.constant 0 : index
    %c0_0 = arith.constant 0 : index
    %c0_1 = arith.constant 0 : index
    %0 = vector.load %arg3[%c0, %c0_0, %c0_1] : memref<1x32x256xf32, #tpu.memory_space<vmem>>, vector<1x32x256xf32>
    %1 = vector.shape_cast %0 : vector<1x32x256xf32> to vector<32x256xf32>
    %c0_2 = arith.constant 0 : index
    %c0_3 = arith.constant 0 : index
    %2 = vector.load %arg4[%c0_2, %c0_3] : memref<24x32xf32, #tpu.memory_space<vmem>>, vector<24x32xf32>
    %cst = arith.constant dense<0.000000e+00> : vector<24x256xf32>
    %3 = tpu.matmul %2, %1, %cst {dimension_numbers = #tpu.dot_dimension_numbers<[1], [0], [0], [1], [0, 0, 1, 1], [], []>} : vector<24x32xf32>, vector<32x256xf32>, vector<24x256xf32> -> vector<24x256xf32>
    %4 = vector.extract_strided_slice %3 {offsets = [0, 0], sizes = [8, 256], strides = [1, 1]} : vector<24x256xf32> to vector<8x256xf32>
    %cst_4 = arith.constant 0.000000e+00 : f32
    %5 = vector.broadcast %cst_4 : f32 to vector<8x256xf32>
    %6 = arith.maximumf %4, %5 : vector<8x256xf32>
    %c0_5 = arith.constant 0 : index
    %c0_6 = arith.constant 0 : index
    %c0_7 = arith.constant 0 : index
    %7 = vector.load %arg5[%c0_5, %c0_6, %c0_7] : memref<2x32x8xf32, #tpu.memory_space<vmem>>, vector<1x32x8xf32>
    %8 = vector.shape_cast %7 : vector<1x32x8xf32> to vector<32x8xf32>
    %cst_8 = arith.constant dense<0.000000e+00> : vector<32x256xf32>
    %9 = tpu.matmul %8, %6, %cst_8 {dimension_numbers = #tpu.dot_dimension_numbers<[1], [0], [0], [1], [0, 0, 1, 1], [], []>} : vector<32x8xf32>, vector<8x256xf32>, vector<32x256xf32> -> vector<32x256xf32>
    %cst_9 = arith.constant 5.000000e-01 : f32
    %10 = vector.broadcast %cst_9 : f32 to vector<32x256xf32>
    %11 = arith.mulf %9, %10 : vector<32x256xf32>
    %12 = math.tanh %11 : vector<32x256xf32>
    %13 = vector.extract_strided_slice %3 {offsets = [8, 0], sizes = [8, 256], strides = [1, 1]} : vector<24x256xf32> to vector<8x256xf32>
    %14 = vector.extract_strided_slice %3 {offsets = [16, 0], sizes = [8, 256], strides = [1, 1]} : vector<24x256xf32> to vector<8x256xf32>
    %15 = arith.mulf %13, %14 : vector<8x256xf32>
    %cst_10 = arith.constant 0.000000e+00 : f32
    %16 = vector.broadcast %cst_10 : f32 to vector<8x256xf32>
    %17 = arith.maximumf %15, %16 : vector<8x256xf32>
    %c1 = arith.constant 1 : index
    %c0_11 = arith.constant 0 : index
    %c0_12 = arith.constant 0 : index
    %18 = vector.load %arg5[%c1, %c0_11, %c0_12] : memref<2x32x8xf32, #tpu.memory_space<vmem>>, vector<1x32x8xf32>
    %19 = vector.shape_cast %18 : vector<1x32x8xf32> to vector<32x8xf32>
    %cst_13 = arith.constant dense<0.000000e+00> : vector<32x256xf32>
    %20 = tpu.matmul %19, %17, %cst_13 {dimension_numbers = #tpu.dot_dimension_numbers<[1], [0], [0], [1], [0, 0, 1, 1], [], []>} : vector<32x8xf32>, vector<8x256xf32>, vector<32x256xf32> -> vector<32x256xf32>
    %cst_14 = arith.constant 5.000000e-01 : f32
    %21 = vector.broadcast %cst_14 : f32 to vector<32x256xf32>
    %22 = arith.mulf %20, %21 : vector<32x256xf32>
    %23 = math.tanh %22 : vector<32x256xf32>
    %24 = arith.addf %12, %23 : vector<32x256xf32>
    %c0_15 = arith.constant 0 : index
    %25 = memref.load %arg2[%c0_15] : memref<2xf32, #tpu.memory_space<smem>>
    %c1_16 = arith.constant 1 : index
    %26 = memref.load %arg2[%c1_16] : memref<2xf32, #tpu.memory_space<smem>>
    %27 = vector.broadcast %25 : f32 to vector<32x256xf32>
    %28 = arith.mulf %24, %27 : vector<32x256xf32>
    %29 = vector.broadcast %26 : f32 to vector<32x256xf32>
    %30 = arith.addf %28, %29 : vector<32x256xf32>
    %31 = arith.mulf %1, %30 : vector<32x256xf32>
    %c0_17 = arith.constant 0 : index
    %c0_18 = arith.constant 0 : index
    %c0_19 = arith.constant 0 : index
    %32 = vector.load %arg6[%c0_17, %c0_18, %c0_19] : memref<1x32x256xf32, #tpu.memory_space<vmem>>, vector<1x32x256xf32>
    %33 = vector.shape_cast %32 : vector<1x32x256xf32> to vector<32x256xf32>
    %34 = vector.shape_cast %31 : vector<32x256xf32> to vector<1x32x256xf32>
    tpu.vector_store %arg6[%c0_17, %c0_18, %c0_19], %34 {strides = array<i32>} : memref<1x32x256xf32, #tpu.memory_space<vmem>>, vector<1x32x256xf32>,
    return
  }
  func.func @transform_0(%arg0: i32, %arg1: i32) -> i32 {
    %c0_i32 = arith.constant 0 : i32
    %c0_i32_0 = arith.constant 0 : i32
    return %c0_i32 : i32
  }
  func.func @transform_1(%arg0: i32, %arg1: i32) -> (i32, i32, i32) {
    %c0_i32 = arith.constant 0 : i32
    %c0_i32_0 = arith.constant 0 : i32
    return %arg0, %c0_i32, %arg1 : i32, i32, i32
  }
  func.func @transform_2(%arg0: i32, %arg1: i32) -> (i32, i32) {
    %c0_i32 = arith.constant 0 : i32
    %c0_i32_0 = arith.constant 0 : i32
    %c0_i32_1 = arith.constant 0 : i32
    return %c0_i32, %c0_i32_0 : i32, i32
  }
  func.func @transform_3(%arg0: i32, %arg1: i32) -> (i32, i32, i32) {
    %c0_i32 = arith.constant 0 : i32
    %c0_i32_0 = arith.constant 0 : i32
    %c0_i32_1 = arith.constant 0 : i32
    %c0_i32_2 = arith.constant 0 : i32
    return %c0_i32, %c0_i32_0, %c0_i32_1 : i32, i32, i32
  }
  func.func @transform_4(%arg0: i32, %arg1: i32) -> (i32, i32, i32) {
    %c0_i32 = arith.constant 0 : i32
    %c0_i32_0 = arith.constant 0 : i32
    return %arg0, %c0_i32, %arg1 : i32, i32, i32
  }
}

</mosaic_0001>

<llo_original>
// kernel: tpu_custom_call.1
$region0: #{tpu_custom_call.1}
  #allocation0 [shape = 'u32[]', space=smem, size = 0x4, offset = 0x4, fixed_abs, tag = 'smem constant byte address 0x4 - core index']
  #allocation1 [shape = 'u32[144,128]{1,0:T(1,128)}', space=vmem, size = 0x12000, scoped, tag = 'internal scratch']
  %s0 = inlined_call_operand.vmem [shape: f32[2], index: 0, kind: input, shape index: {}]
  %s1 = inlined_call_operand.hbm [shape: f32[2,32,256], index: 1, kind: input, shape index: {}]
  %s2 = inlined_call_operand.vmem [shape: f32[24,32], index: 2, kind: input, shape index: {}]
  %s3 = inlined_call_operand.vmem [shape: f32[2,32,8], index: 3, kind: input, shape index: {}]
  %s4 = inlined_call_operand.hbm [shape: f32[2,32,256], index: 4, kind: output, shape index: {}]
  %s5 = sld [smem:[#allocation0]]
  $region57: #{tpu_custom_call.1} parent=0
    _
  %s7 = ssub.s32 1, %s5
  %s8 = scalar_select 0, %s7, %s5
  $region1: #{tpu_custom_call.1} parent=0
    #allocation2 [shape = 'u8[512]{0}', space=smem, size = 0x200, scoped, tag = 'input window, operand 0, single buffered']
    #allocation3 [shape = 's32[2]{0}', space=sflag, size = 0x8, scoped, tag = 'scoped memory for tpu_custom_call.1']
    #allocation4 [shape = 's32[2]{0}', space=sflag, size = 0x8, scoped, tag = 'scoped memory for tpu_custom_call.1']
    #allocation5 [shape = 's32[2]{0}', space=sflag, size = 0x8, scoped, tag = 'scoped memory for tpu_custom_call.1']
    #allocation6 [shape = 'u8[65536]{0}', space=vmem, size = 0x10000, scoped, tag = 'input window, operand 1']
    #allocation7 [shape = 'u8[65536]{0}', space=vmem, size = 0x10000, scoped, tag = 'output window, operand 0']
    %9 = vsyncpa [#allocation5], 0
    %10 = vsyncpa [#allocation3], 0
    %s11 = scalar_lea.sflag [#allocation3], 1
    %12 = vsyncpa %s11, 0
    %13 = vsyncpa [#allocation4], 0
    %s14 = scalar_lea.sflag [#allocation4], 1
    %15 = vsyncpa %s14, 0
    loop: start=0, step=1, limit=4
    $region2: #{tpu_custom_call.1} parent=1 // loop_pre_header
      _
    $region3: #{tpu_custom_call.1} parent=1 // loop_header
      %s17 = sphi 0, %s21
      %p18 = scmp.ge.s32.totalorder %s17, 4
      %s24 = sphi 0, %s36
      %s25 = sphi 0, %s32
      %s26 = sphi 0, %s24
      %s27 = sphi 0, %s25
      %s28 = sphi 0, %s26
      %s29 = sphi 0, %s27
      %s37 = sphi 0, %s37
      %s39 = sphi 0, %s37
      %s40 = sphi 0, %s39
      %s54 = sphi 0, %s40
      %s62 = sphi 0, %s64
      %s65 = sphi 0, %s62
      %s66 = sphi 0, %s65
      %s82 = sphi 0, %s66
      %s86 = sphi 0, %s86
      %s88 = sphi 0, %s86
      %s89 = sphi 0, %s88
      %s103 = sphi 0, %s89
      %s107 = sphi 0, %s107
      %s109 = sphi 0, %s107
      %s110 = sphi 0, %s109
      %s124 = sphi 0, %s110
      %s132 = sphi 0, %s134
      %s135 = sphi 0, %s132
      %s136 = sphi 0, %s135
      %s152 = sphi 0, %s136
    $region4: #{tpu_custom_call.1} parent=1 // loop_header_branch
      %20 = sbr.rel (%p18) target = $region8
    $region5: #{tpu_custom_call.1} parent=1 // loop_body
      %s22 = ssub.s32 %s17, 1
      %s23 = ssub.s32 %s17, 2
      %s30 = sadd.s32 1, %s25
      %p31 = scmp.ge.s32.totalorder %s30, 1
      %s32 = scalar_select %p31, 0, %s30
      %s33 = sadd.s32 1, %s24
      %s34 = scalar_select %p31, %s33, %s24
      %p35 = scmp.ge.s32.totalorder %s34, 2
      %s36 = scalar_select %p35, 0, %s34
      %s38 = sadd.s32 %s37, 1
      %p41 = scmp.eq.s32.totalorder %s17, 1
      %p42 = scmp.ne.s32.totalorder %s37, %s39
      %p43 = scmp.eq.s32.totalorder %s17, 0
      %p44 = por %p42, %p43
      %p45 = scmp.ne.s32.totalorder %s37, %s39
      %p46 = scmp.eq.s32.totalorder %s22, 1
      %p47 = por %p45, %p46
      %p48 = scmp.ne.s32.totalorder %s39, %s40
      %p49 = scmp.eq.s32.totalorder %s22, 0
      %p50 = por %p48, %p49
      %p51 = scmp.ne.s32.totalorder %s39, %s40
      %p52 = scmp.eq.s32.totalorder %s23, 1
      %p53 = por %p51, %p52
      %p55 = scmp.ne.s32.totalorder %s40, %s54
      %p56 = scmp.eq.s32.totalorder %s23, 0
      %p57 = por %p55, %p56
      %s58 = ssub.s32 %s24, %s36
      %s59 = ssub.s32 %s25, %s32
      %s60 = sor.u32 %s58, %s59
      %p61 = scmp.eq.s32.totalorder %s60, 0
      %s63 = sadd.s32 %s62, 1
      %s64 = scalar_select %p61, %s62, %s63
      %p67 = pneg %p61
      %p68 = scmp.eq.s32.totalorder %s17, 1
      %p69 = por %p67, %p68
      %p70 = scmp.ne.s32.totalorder %s62, %s65
      %p71 = scmp.eq.s32.totalorder %s17, 0
      %p72 = por %p70, %p71
      %p73 = scmp.ne.s32.totalorder %s62, %s65
      %p74 = scmp.eq.s32.totalorder %s22, 1
      %p75 = por %p73, %p74
      %p76 = scmp.ne.s32.totalorder %s65, %s66
      %p77 = scmp.eq.s32.totalorder %s22, 0
      %p78 = por %p76, %p77
      %p79 = scmp.ne.s32.totalorder %s65, %s66
      %p80 = scmp.eq.s32.totalorder %s23, 1
      %p81 = por %p79, %p80
      %p83 = scmp.ne.s32.totalorder %s66, %s82
      %p84 = scmp.eq.s32.totalorder %s23, 0
      %p85 = por %p83, %p84
      %s87 = sadd.s32 %s86, 1
      %p90 = scmp.eq.s32.totalorder %s17, 1
      %p91 = scmp.ne.s32.totalorder %s86, %s88
      %p92 = scmp.eq.s32.totalorder %s17, 0
      %p93 = por %p91, %p92
      %p94 = scmp.ne.s32.totalorder %s86, %s88
      %p95 = scmp.eq.s32.totalorder %s22, 1
      %p96 = por %p94, %p95
      %p97 = scmp.ne.s32.totalorder %s88, %s89
      %p98 = scmp.eq.s32.totalorder %s22, 0
      %p99 = por %p97, %p98
      %p100 = scmp.ne.s32.totalorder %s88, %s89
      %p101 = scmp.eq.s32.totalorder %s23, 1
      %p102 = por %p100, %p101
      %p104 = scmp.ne.s32.totalorder %s89, %s103
      %p105 = scmp.eq.s32.totalorder %s23, 0
      %p106 = por %p104, %p105
      %s108 = sadd.s32 %s107, 1
      %p111 = scmp.eq.s32.totalorder %s17, 1
      %p112 = scmp.ne.s32.totalorder %s107, %s109
      %p113 = scmp.eq.s32.totalorder %s17, 0
      %p114 = por %p112, %p113
      %p115 = scmp.ne.s32.totalorder %s107, %s109
      %p116 = scmp.eq.s32.totalorder %s22, 1
      %p117 = por %p115, %p116
      %p118 = scmp.ne.s32.totalorder %s109, %s110
      %p119 = scmp.eq.s32.totalorder %s22, 0
      %p120 = por %p118, %p119
      %p121 = scmp.ne.s32.totalorder %s109, %s110
      %p122 = scmp.eq.s32.totalorder %s23, 1
      %p123 = por %p121, %p122
      %p125 = scmp.ne.s32.totalorder %s110, %s124
      %p126 = scmp.eq.s32.totalorder %s23, 0
      %p127 = por %p125, %p126
      %s128 = ssub.s32 %s24, %s36
      %s129 = ssub.s32 %s25, %s32
      %s130 = sor.u32 %s128, %s129
      %p131 = scmp.eq.s32.totalorder %s130, 0
      %s133 = sadd.s32 %s132, 1
      %s134 = scalar_select %p131, %s132, %s133
      %p137 = pneg %p131
      %p138 = scmp.eq.s32.totalorder %s17, 1
      %p139 = por %p137, %p138
      %p140 = scmp.ne.s32.totalorder %s132, %s135
      %p141 = scmp.eq.s32.totalorder %s17, 0
      %p142 = por %p140, %p141
      %p143 = scmp.ne.s32.totalorder %s132, %s135
      %p144 = scmp.eq.s32.totalorder %s22, 1
      %p145 = por %p143, %p144
      %p146 = scmp.ne.s32.totalorder %s135, %s136
      %p147 = scmp.eq.s32.totalorder %s22, 0
      %p148 = por %p146, %p147
      %p149 = scmp.ne.s32.totalorder %s135, %s136
      %p150 = scmp.eq.s32.totalorder %s23, 1
      %p151 = por %p149, %p150
      %p153 = scmp.ne.s32.totalorder %s136, %s152
      %p154 = scmp.eq.s32.totalorder %s23, 0
      %p155 = por %p153, %p154
      %p156 = scmp.le.s32.totalorder 1, %s17
      %p157 = scmp.lt.s32.totalorder %s17, 3
      %p158 = pnand %p156, %p157
      %p159 = pneg %p158
      // Predicated region
      $region9: #{tpu_custom_call.1} parent=5 // pred_check
        _
      $region10: #{tpu_custom_call.1} parent=5 // pred_check_branch
        %161 = sbr.rel (%p158) target = $region12
      $region11: #{tpu_custom_call.1} parent=5 // pred_region
        %s162 = ssub.s32 %s17, 1
        // Predicated region
        $region13: #{tpu_custom_call.1} parent=11 // pred_check
          %p163 = pneg %p50
        $region14: #{tpu_custom_call.1} parent=11 // pred_check_branch
          %165 = sbr.rel (%p163) target = $region16
        $region15: #{tpu_custom_call.1} parent=11 // pred_region
          %s167 = ssub.s32 16, 16
          %168 = vsyncadd [#allocation5], %s167
          %s170 = sshll.u32 %s0, 4
          %s171 = int_to_ptr.vmem [resolvable:$true] %s170
          %173 = dma.vmem_to_smem %s171, 16, [#allocation2], [#allocation5]
        $region16: #{tpu_custom_call.1} parent=11 // pred_fallthru
          _
        // Predicated region
        $region17: #{tpu_custom_call.1} parent=11 // pred_check
          %p174 = pneg %p99
        $region18: #{tpu_custom_call.1} parent=11 // pred_check_branch
          %176 = sbr.rel (%p174) target = $region20
        $region19: #{tpu_custom_call.1} parent=11 // pred_region
          _
        $region20: #{tpu_custom_call.1} parent=11 // pred_fallthru
          _
        // Predicated region
        $region21: #{tpu_custom_call.1} parent=11 // pred_check
          %p177 = pneg %p120
        $region22: #{tpu_custom_call.1} parent=11 // pred_check_branch
          %179 = sbr.rel (%p177) target = $region24
        $region23: #{tpu_custom_call.1} parent=11 // pred_region
          _
        $region24: #{tpu_custom_call.1} parent=11 // pred_fallthru
          _
      $region12: #{tpu_custom_call.1} parent=5 // pred_fallthru
        _
      %p180 = scmp.lt.s32.totalorder %s17, 2
      // Predicated region
      $region25: #{tpu_custom_call.1} parent=5 // pred_check
        %p181 = pneg %p180
      $region26: #{tpu_custom_call.1} parent=5 // pred_check_branch
        %183 = sbr.rel (%p181) target = $region28
      $region27: #{tpu_custom_call.1} parent=5 // pred_region
        // Predicated region
        $region29: #{tpu_custom_call.1} parent=27 // pred_check
          %p184 = pneg %p72
        $region30: #{tpu_custom_call.1} parent=27 // pred_check_branch
          %186 = sbr.rel (%p184) target = $region32
        $region31: #{tpu_custom_call.1} parent=27 // pred_region
          %s187 = sand.u32 %s62, 1
          %s188 = scalar_lea.sflag [#allocation3], %s187
          %s189 = sand.u32 %s62, 1
          %s190 = smul.addr %s189, 64
          %s191 = scalar_lea.vmem [#allocation6], %s190
          %s192 = smul.u32 2, %s25
          %s194 = ssub.s32 1024, 1024
          %195 = vsyncadd %s188, %s194
          %s196 = smul.addr %s24, 8
          %s197 = sadd.s32 %s192, %s196
          %s198 = smul.addr %s197, 128
          %s199 = scalar_lea.hbm %s1, %s198
          %s200 = sshll.u32 %s191, 4
          %s201 = int_to_ptr.vmem [resolvable:$true] %s200
          %206 = dma.hbm_to_vmem [thread:$0]  %s199, 1024, %s201, %s188, 256, 256, 16
        $region32: #{tpu_custom_call.1} parent=27 // pred_fallthru
          _
      $region28: #{tpu_custom_call.1} parent=5 // pred_fallthru
        _
      %p207 = scmp.le.s32.totalorder 1, %s17
      %p208 = scmp.lt.s32.totalorder %s17, 3
      %p209 = pnand %p207, %p208
      %p210 = pneg %p209
      // Predicated region
      $region33: #{tpu_custom_call.1} parent=5 // pred_check
        _
      $region34: #{tpu_custom_call.1} parent=5 // pred_check_branch
        %212 = sbr.rel (%p209) target = $region36
      $region35: #{tpu_custom_call.1} parent=5 // pred_region
        %s213 = ssub.s32 %s17, 1
        // Predicated region
        $region37: #{tpu_custom_call.1} parent=35 // pred_check
          %p214 = pneg %p50
        $region38: #{tpu_custom_call.1} parent=35 // pred_check_branch
          %216 = sbr.rel (%p214) target = $region40
        $region39: #{tpu_custom_call.1} parent=35 // pred_region
          %217 = dma.done [#allocation5], 16
        $region40: #{tpu_custom_call.1} parent=35 // pred_fallthru
          _
        %s218 = sand.u32 %s65, 1
        %s219 = scalar_lea.sflag [#allocation3], %s218
        %s220 = sand.u32 %s65, 1
        %s221 = smul.addr %s220, 64
        %s222 = scalar_lea.vmem [#allocation6], %s221
        // Predicated region
        $region41: #{tpu_custom_call.1} parent=35 // pred_check
          %p223 = pneg %p78
        $region42: #{tpu_custom_call.1} parent=35 // pred_check_branch
          %225 = sbr.rel (%p223) target = $region44
        $region43: #{tpu_custom_call.1} parent=35 // pred_region
          %226 = dma.done %s219, 1024
        $region44: #{tpu_custom_call.1} parent=35 // pred_fallthru
          _
        %227 = sfence
        %p228 = pneg %p50
        %p229 = pneg %p47
        %s230 = sand.u32 %s65, 1
        %s231 = scalar_lea.sflag [#allocation3], %s230
        %s232 = sand.u32 %s65, 1
        %s233 = smul.addr %s232, 64
        %s234 = scalar_lea.vmem [#allocation6], %s233
        %p235 = pneg %p78
        %p236 = pneg %p75
        %p237 = pneg %p99
        %p238 = pneg %p96
        %p239 = pneg %p120
        %p240 = pneg %p117
        %p241 = pneg %p148
        %p242 = pneg %p145
        %s243 = sand.u32 %s135, 1
        %s244 = scalar_lea.sflag [#allocation4], %s243
        %s245 = sand.u32 %s135, 1
        %s246 = smul.addr %s245, 64
        %s247 = scalar_lea.vmem [#allocation7], %s246
        %s248 = smul.u32 2, %s27
        %s249 = smul.u32 2, %s27
        %v250 = vld [vmem:[%s222] sm:$0xff]
        %v251 = vld [vmem:[%s222 + $0x8] sm:$0xff]
        %v252 = vld [vmem:[%s222 + $0x10] sm:$0xff]
        %v253 = vld [vmem:[%s222 + $0x18] sm:$0xff]
        %v254 = vld [vmem:[%s222 + $0x20] sm:$0xff]
        %v255 = vld [vmem:[%s222 + $0x28] sm:$0xff]
        %v256 = vld [vmem:[%s222 + $0x30] sm:$0xff]
        %v257 = vld [vmem:[%s222 + $0x38] sm:$0xff]
        %v258 = vld [vmem:[%s2] sm:$0xff]
        %v259 = vld [vmem:[%s2 + $0x8] sm:$0xff]
        %v260 = vld [vmem:[%s2 + $0x10] sm:$0xff]
        %vm261 = vcmask 261120
        %v263 = vsel %vm261, %v258, 0
        %v266 = vsel %vm261, %v259, 0
        %v269 = vsel %vm261, %v260, 0
        %271 = vmatprep.subr.mxu0 %v251
        %272 = vmatpush1.msra.mxu0 %v250
        %273 = vmatprep.subr.mxu0 %v253
        %274 = vmatpush1.msra.mxu0 %v252
        %275 = vmatprep.subr.mxu0 %v255
        %276 = vmatpush1.msra.mxu0 %v254
        %277 = vmatprep.subr.mxu0 %v257
        %278 = vmatpush1.msra.mxu0 %v256
        %279 = vmatprep.subr.mxu0 0.0
        %280 = vmatpush1.msra.mxu0 0.0
        %281 = vmatprep.subr.mxu0 0.0
        %282 = vmatpush1.msra.mxu0 0.0
        %283 = vmatprep.subr.mxu0 0.0
        %284 = vmatpush1.msra.mxu0 0.0
        %285 = vmatprep.subr.mxu0 0.0
        %286 = vmatpush1.msra.mxu0 0.0
        %287 = vmatprep.subr.mxu0 0.0
        %288 = vmatpush1.msra.mxu0 0.0
        %289 = vmatprep.subr.mxu0 0.0
        %290 = vmatpush1.msra.mxu0 0.0
        %291 = vmatprep.subr.mxu0 0.0
        %292 = vmatpush1.msra.mxu0 0.0
        %293 = vmatprep.subr.mxu0 0.0
        %294 = vmatpush1.msra.mxu0 0.0
        %295 = vmatprep.subr.mxu0 0.0
        %296 = vmatpush1.msra.mxu0 0.0
        %297 = vmatprep.subr.mxu0 0.0
        %298 = vmatpush1.msra.mxu0 0.0
        %299 = vmatprep.subr.mxu0 0.0
        %300 = vmatpush1.msra.mxu0 0.0
        %301 = vmatprep.subr.mxu0 0.0
        %302 = vmatpush1.msra.mxu0 0.0
        %303 = vmatprep.subr.mxu0 0.0
        %304 = vmatpush1.msra.mxu0 0.0
        %305 = vmatprep.subr.mxu0 0.0
        %306 = vmatpush1.msra.mxu0 0.0
        %307 = vmatprep.subr.mxu0 0.0
        %308 = vmatpush1.msra.mxu0 0.0
        %309 = vmatprep.subr.mxu0 0.0
        %310 = vmatpush1.msra.mxu0 0.0
        %311 = vmatprep.subr.mxu0 0.0
        %312 = vmatpush1.msra.mxu0 0.0
        %313 = vmatprep.subr.mxu0 0.0
        %314 = vmatpush1.msra.mxu0 0.0
        %315 = vmatprep.subr.mxu0 0.0
        %316 = vmatpush1.msra.mxu0 0.0
        %317 = vmatprep.subr.mxu0 0.0
        %318 = vmatpush1.msra.mxu0 0.0
        %319 = vmatprep.subr.mxu0 0.0
        %320 = vmatpush1.msra.mxu0 0.0
        %321 = vmatprep.subr.mxu0 0.0
        %322 = vmatpush1.msra.mxu0 0.0
        %323 = vmatprep.subr.mxu0 0.0
        %324 = vmatpush1.msra.mxu0 0.0
        %325 = vmatprep.subr.mxu0 0.0
        %326 = vmatpush1.msra.mxu0 0.0
        %327 = vmatprep.subr.mxu0 0.0
        %328 = vmatpush1.msra.mxu0 0.0
        %329 = vmatprep.subr.mxu0 0.0
        %330 = vmatpush1.msra.mxu0 0.0
        %331 = vmatprep.subr.mxu0 0.0
        %332 = vmatpush1.msra.mxu0 0.0
        %333 = vmatprep.subr.mxu0 0.0
        %334 = vmatpush1.msra.mxu0 0.0
        %335 = vmatprep.mubr.f32.mxu0 0.0
        %336 = vmatmul.mubr.f32.gmra.mrb[0].mxu0 %v263
        %v337 = vpop.f32.mrb[0].mxu0
        %v338 = vadd.f32 0.0, %v337
        %v339 = vpop.f32.mrb[0].mxu0
        %v340 = vadd.f32 0.0, %v339
        %341 = vmatprep.mubr.f32.mxu0 0.0
        %342 = vmatmul.mubr.f32.gmra.mrb[0].mxu0 %v266
        %v343 = vpop.f32.mrb[0].mxu0
        %v344 = vadd.f32 0.0, %v343
        %v345 = vpop.f32.mrb[0].mxu0
        %v346 = vadd.f32 0.0, %v345
        %347 = vmatprep.mubr.f32.mxu0 0.0
        %348 = vmatmul.mubr.f32.gmra.mrb[0].mxu0 %v269
        %v349 = vpop.f32.mrb[0].mxu0
        %v350 = vadd.f32 0.0, %v349
        %v351 = vpop.f32.mrb[0].mxu0
        %v352 = vadd.f32 0.0, %v351
        %353 = vdwg.mxu0
        %v354 = vmax.f32 %v338, 0.0
        %v355 = vmax.f32 %v340, 0.0
        %v356 = vld [vmem:[%s3] sm:$0xff]
        %v357 = vld [vmem:[%s3 + $0x8] sm:$0xff]
        %v358 = vld [vmem:[%s3 + $0x10] sm:$0xff]
        %v359 = vld [vmem:[%s3 + $0x18] sm:$0xff]
        %vm360 = vcmask 64512
        %v362 = vsel %vm360, %v356, 0
        %v365 = vsel %vm360, %v357, 0
        %v368 = vsel %vm360, %v358, 0
        %v371 = vsel %vm360, %v359, 0
        %373 = vmatprep.subr.mxu0 %v355
        %374 = vmatpush1.msra.mxu0 %v354
        %375 = vmatprep.subr.mxu0 0.0
        %376 = vmatpush1.msra.mxu0 0.0
        %377 = vmatprep.subr.mxu0 0.0
        %378 = vmatpush1.msra.mxu0 0.0
        %379 = vmatprep.subr.mxu0 0.0
        %380 = vmatpush1.msra.mxu0 0.0
        %381 = vmatprep.subr.mxu0 0.0
        %382 = vmatpush1.msra.mxu0 0.0
        %383 = vmatprep.subr.mxu0 0.0
        %384 = vmatpush1.msra.mxu0 0.0
        %385 = vmatprep.subr.mxu0 0.0
        %386 = vmatpush1.msra.mxu0 0.0
        %387 = vmatprep.subr.mxu0 0.0
        %388 = vmatpush1.msra.mxu0 0.0
        %389 = vmatprep.subr.mxu0 0.0
        %390 = vmatpush1.msra.mxu0 0.0
        %391 = vmatprep.subr.mxu0 0.0
        %392 = vmatpush1.msra.mxu0 0.0
        %393 = vmatprep.subr.mxu0 0.0
        %394 = vmatpush1.msra.mxu0 0.0
        %395 = vmatprep.subr.mxu0 0.0
        %396 = vmatpush1.msra.mxu0 0.0
        %397 = vmatprep.subr.mxu0 0.0
        %398 = vmatpush1.msra.mxu0 0.0
        %399 = vmatprep.subr.mxu0 0.0
        %400 = vmatpush1.msra.mxu0 0.0
        %401 = vmatprep.subr.mxu0 0.0
        %402 = vmatpush1.msra.mxu0 0.0
        %403 = vmatprep.subr.mxu0 0.0
        %404 = vmatpush1.msra.mxu0 0.0
        %405 = vmatprep.subr.mxu0 0.0
        %406 = vmatpush1.msra.mxu0 0.0
        %407 = vmatprep.subr.mxu0 0.0
        %408 = vmatpush1.msra.mxu0 0.0
        %409 = vmatprep.subr.mxu0 0.0
        %410 = vmatpush1.msra.mxu0 0.0
        %411 = vmatprep.subr.mxu0 0.0
        %412 = vmatpush1.msra.mxu0 0.0
        %413 = vmatprep.subr.mxu0 0.0
        %414 = vmatpush1.msra.mxu0 0.0
        %415 = vmatprep.subr.mxu0 0.0
        %416 = vmatpush1.msra.mxu0 0.0
        %417 = vmatprep.subr.mxu0 0.0
        %418 = vmatpush1.msra.mxu0 0.0
        %419 = vmatprep.subr.mxu0 0.0
        %420 = vmatpush1.msra.mxu0 0.0
        %421 = vmatprep.subr.mxu0 0.0
        %422 = vmatpush1.msra.mxu0 0.0
        %423 = vmatprep.subr.mxu0 0.0
        %424 = vmatpush1.msra.mxu0 0.0
        %425 = vmatprep.subr.mxu0 0.0
        %426 = vmatpush1.msra.mxu0 0.0
        %427 = vmatprep.subr.mxu0 0.0
        %428 = vmatpush1.msra.mxu0 0.0
        %429 = vmatprep.subr.mxu0 0.0
        %430 = vmatpush1.msra.mxu0 0.0
        %431 = vmatprep.subr.mxu0 0.0
        %432 = vmatpush1.msra.mxu0 0.0
        %433 = vmatprep.subr.mxu0 0.0
        %434 = vmatpush1.msra.mxu0 0.0
        %435 = vmatprep.subr.mxu0 0.0
        %436 = vmatpush1.msra.mxu0 0.0
        %437 = vmatprep.mubr.f32.mxu0 0.0
        %438 = vmatmul.mubr.f32.gmra.mrb[0].mxu0 %v362
        %v439 = vpop.f32.mrb[0].mxu0
        %v440 = vadd.f32 0.0, %v439
        %v441 = vpop.f32.mrb[0].mxu0
        %v442 = vadd.f32 0.0, %v441
        %443 = vmatprep.mubr.f32.mxu0 0.0
        %444 = vmatmul.mubr.f32.gmra.mrb[0].mxu0 %v365
        %v445 = vpop.f32.mrb[0].mxu0
        %v446 = vadd.f32 0.0, %v445
        %v447 = vpop.f32.mrb[0].mxu0
        %v448 = vadd.f32 0.0, %v447
        %449 = vmatprep.mubr.f32.mxu0 0.0
        %450 = vmatmul.mubr.f32.gmra.mrb[0].mxu0 %v368
        %v451 = vpop.f32.mrb[0].mxu0
        %v452 = vadd.f32 0.0, %v451
        %v453 = vpop.f32.mrb[0].mxu0
        %v454 = vadd.f32 0.0, %v453
        %455 = vmatprep.mubr.f32.mxu0 0.0
        %456 = vmatmul.mubr.f32.gmra.mrb[0].mxu0 %v371
        %v457 = vpop.f32.mrb[0].mxu0
        %v458 = vadd.f32 0.0, %v457
        %v459 = vpop.f32.mrb[0].mxu0
        %v460 = vadd.f32 0.0, %v459
        %461 = vdwg.mxu0
        %v462 = vmul.f32 %v440, 0.5
        %v463 = vmul.f32 %v442, 0.5
        %v464 = vmul.f32 %v446, 0.5
        %v465 = vmul.f32 %v448, 0.5
        %v466 = vmul.f32 %v452, 0.5
        %v467 = vmul.f32 %v454, 0.5
        %v468 = vmul.f32 %v458, 0.5
        %v469 = vmul.f32 %v460, 0.5
        %v470 = vtanh.pop %v462
        %v471 = vtanh.pop %v463
        %v472 = vtanh.pop %v464
        %v473 = vtanh.pop %v465
        %v474 = vtanh.pop %v466
        %v475 = vtanh.pop %v467
        %v476 = vtanh.pop %v468
        %v477 = vtanh.pop %v469
        %v478 = vmul.f32 %v344, %v350
        %v479 = vmul.f32 %v346, %v352
        %v480 = vmax.f32 %v478, 0.0
        %v481 = vmax.f32 %v479, 0.0
        %s482 = scalar_lea.vmem %s3, 32
        %v483 = vld [vmem:[%s482] sm:$0xff]
        %v484 = vld [vmem:[%s482 + $0x8] sm:$0xff]
        %v485 = vld [vmem:[%s482 + $0x10] sm:$0xff]
        %v486 = vld [vmem:[%s482 + $0x18] sm:$0xff]
        %v488 = vsel %vm360, %v483, 0
        %v491 = vsel %vm360, %v484, 0
        %v494 = vsel %vm360, %v485, 0
        %v497 = vsel %vm360, %v486, 0
        %499 = vmatprep.subr.mxu0 %v481
        %500 = vmatpush1.msra.mxu0 %v480
        %501 = vmatprep.subr.mxu0 0.0
        %502 = vmatpush1.msra.mxu0 0.0
        %503 = vmatprep.subr.mxu0 0.0
        %504 = vmatpush1.msra.mxu0 0.0
        %505 = vmatprep.subr.mxu0 0.0
        %506 = vmatpush1.msra.mxu0 0.0
        %507 = vmatprep.subr.mxu0 0.0
        %508 = vmatpush1.msra.mxu0 0.0
        %509 = vmatprep.subr.mxu0 0.0
        %510 = vmatpush1.msra.mxu0 0.0
        %511 = vmatprep.subr.mxu0 0.0
        %512 = vmatpush1.msra.mxu0 0.0
        %513 = vmatprep.subr.mxu0 0.0
        %514 = vmatpush1.msra.mxu0 0.0
        %515 = vmatprep.subr.mxu0 0.0
        %516 = vmatpush1.msra.mxu0 0.0
        %517 = vmatprep.subr.mxu0 0.0
        %518 = vmatpush1.msra.mxu0 0.0
        %519 = vmatprep.subr.mxu0 0.0
        %520 = vmatpush1.msra.mxu0 0.0
        %521 = vmatprep.subr.mxu0 0.0
        %522 = vmatpush1.msra.mxu0 0.0
        %523 = vmatprep.subr.mxu0 0.0
        %524 = vmatpush1.msra.mxu0 0.0
        %525 = vmatprep.subr.mxu0 0.0
        %526 = vmatpush1.msra.mxu0 0.0
        %527 = vmatprep.subr.mxu0 0.0
        %528 = vmatpush1.msra.mxu0 0.0
        %529 = vmatprep.subr.mxu0 0.0
        %530 = vmatpush1.msra.mxu0 0.0
        %531 = vmatprep.subr.mxu0 0.0
        %532 = vmatpush1.msra.mxu0 0.0
        %533 = vmatprep.subr.mxu0 0.0
        %534 = vmatpush1.msra.mxu0 0.0
        %535 = vmatprep.subr.mxu0 0.0
        %536 = vmatpush1.msra.mxu0 0.0
        %537 = vmatprep.subr.mxu0 0.0
        %538 = vmatpush1.msra.mxu0 0.0
        %539 = vmatprep.subr.mxu0 0.0
        %540 = vmatpush1.msra.mxu0 0.0
        %541 = vmatprep.subr.mxu0 0.0
        %542 = vmatpush1.msra.mxu0 0.0
        %543 = vmatprep.subr.mxu0 0.0
        %544 = vmatpush1.msra.mxu0 0.0
        %545 = vmatprep.subr.mxu0 0.0
        %546 = vmatpush1.msra.mxu0 0.0
        %547 = vmatprep.subr.mxu0 0.0
        %548 = vmatpush1.msra.mxu0 0.0
        %549 = vmatprep.subr.mxu0 0.0
        %550 = vmatpush1.msra.mxu0 0.0
        %551 = vmatprep.subr.mxu0 0.0
        %552 = vmatpush1.msra.mxu0 0.0
        %553 = vmatprep.subr.mxu0 0.0
        %554 = vmatpush1.msra.mxu0 0.0
        %555 = vmatprep.subr.mxu0 0.0
        %556 = vmatpush1.msra.mxu0 0.0
        %557 = vmatprep.subr.mxu0 0.0
        %558 = vmatpush1.msra.mxu0 0.0
        %559 = vmatprep.subr.mxu0 0.0
        %560 = vmatpush1.msra.mxu0 0.0
        %561 = vmatprep.subr.mxu0 0.0
        %562 = vmatpush1.msra.mxu0 0.0
        %563 = vmatprep.mubr.f32.mxu0 0.0
        %564 = vmatmul.mubr.f32.gmra.mrb[0].mxu0 %v488
        %v565 = vpop.f32.mrb[0].mxu0
        %v566 = vadd.f32 0.0, %v565
        %v567 = vpop.f32.mrb[0].mxu0
        %v568 = vadd.f32 0.0, %v567
        %569 = vmatprep.mubr.f32.mxu0 0.0
        %570 = vmatmul.mubr.f32.gmra.mrb[0].mxu0 %v491
        %v571 = vpop.f32.mrb[0].mxu0
        %v572 = vadd.f32 0.0, %v571
        %v573 = vpop.f32.mrb[0].mxu0
        %v574 = vadd.f32 0.0, %v573
        %575 = vmatprep.mubr.f32.mxu0 0.0
        %576 = vmatmul.mubr.f32.gmra.mrb[0].mxu0 %v494
        %v577 = vpop.f32.mrb[0].mxu0
        %v578 = vadd.f32 0.0, %v577
        %v579 = vpop.f32.mrb[0].mxu0
        %v580 = vadd.f32 0.0, %v579
        %581 = vmatprep.mubr.f32.mxu0 0.0
        %582 = vmatmul.mubr.f32.gmra.mrb[0].mxu0 %v497
        %v583 = vpop.f32.mrb[0].mxu0
        %v584 = vadd.f32 0.0, %v583
        %v585 = vpop.f32.mrb[0].mxu0
        %v586 = vadd.f32 0.0, %v585
        %587 = vdwg.mxu0
        %v588 = vmul.f32 %v566, 0.5
        %v589 = vmul.f32 %v568, 0.5
        %v590 = vmul.f32 %v572, 0.5
        %v591 = vmul.f32 %v574, 0.5
        %v592 = vmul.f32 %v578, 0.5
        %v593 = vmul.f32 %v580, 0.5
        %v594 = vmul.f32 %v584, 0.5
        %v595 = vmul.f32 %v586, 0.5
        %v596 = vtanh.pop %v588
        %v597 = vtanh.pop %v589
        %v598 = vtanh.pop %v590
        %v599 = vtanh.pop %v591
        %v600 = vtanh.pop %v592
        %v601 = vtanh.pop %v593
        %v602 = vtanh.pop %v594
        %v603 = vtanh.pop %v595
        %v604 = vadd.f32 %v470, %v596
        %v605 = vadd.f32 %v471, %v597
        %v606 = vadd.f32 %v472, %v598
        %v607 = vadd.f32 %v473, %v599
        %v608 = vadd.f32 %v474, %v600
        %v609 = vadd.f32 %v475, %v601
        %v610 = vadd.f32 %v476, %v602
        %v611 = vadd.f32 %v477, %v603
        %s612 = sld [smem:[#allocation2]]
        %s613 = sld [smem:[#allocation2 + $0x1]]
        %v614 = vstv %s612
        %v615 = vmul.f32 %v604, %v614
        %v616 = vmul.f32 %v605, %v614
        %v617 = vmul.f32 %v606, %v614
        %v618 = vmul.f32 %v607, %v614
        %v619 = vmul.f32 %v608, %v614
        %v620 = vmul.f32 %v609, %v614
        %v621 = vmul.f32 %v610, %v614
        %v622 = vmul.f32 %v611, %v614
        %v623 = vstv %s613
        %v624 = vadd.f32 %v615, %v623
        %v625 = vadd.f32 %v616, %v623
        %v626 = vadd.f32 %v617, %v623
        %v627 = vadd.f32 %v618, %v623
        %v628 = vadd.f32 %v619, %v623
        %v629 = vadd.f32 %v620, %v623
        %v630 = vadd.f32 %v621, %v623
        %v631 = vadd.f32 %v622, %v623
        %v632 = vmul.f32 %v250, %v624
        %v633 = vmul.f32 %v251, %v625
        %v634 = vmul.f32 %v252, %v626
        %v635 = vmul.f32 %v253, %v627
        %v636 = vmul.f32 %v254, %v628
        %v637 = vmul.f32 %v255, %v629
        %v638 = vmul.f32 %v256, %v630
        %v639 = vmul.f32 %v257, %v631
        %640 = vst [vmem:[%s247] sm:$0xff] %v632
        %641 = vst [vmem:[%s247 + $0x8] sm:$0xff] %v633
        %642 = vst [vmem:[%s247 + $0x10] sm:$0xff] %v634
        %643 = vst [vmem:[%s247 + $0x18] sm:$0xff] %v635
        %644 = vst [vmem:[%s247 + $0x20] sm:$0xff] %v636
        %645 = vst [vmem:[%s247 + $0x28] sm:$0xff] %v637
        %646 = vst [vmem:[%s247 + $0x30] sm:$0xff] %v638
        %647 = vst [vmem:[%s247 + $0x38] sm:$0xff] %v639
        %s648 = sand.u32 %s135, 1
        %s649 = scalar_lea.sflag [#allocation4], %s648
        %s650 = sand.u32 %s135, 1
        %s651 = smul.addr %s650, 64
        %s652 = scalar_lea.vmem [#allocation7], %s651
        // Predicated region
        $region45: #{tpu_custom_call.1} parent=35 // pred_check
          %p653 = pneg %p145
        $region46: #{tpu_custom_call.1} parent=35 // pred_check_branch
          %655 = sbr.rel (%p653) target = $region48
        $region47: #{tpu_custom_call.1} parent=35 // pred_region
          %s656 = smul.u32 2, %s27
          %s658 = ssub.s32 1024, 1024
          %659 = vsyncadd %s649, %s658
          %s660 = smul.addr %s26, 8
          %s661 = sadd.s32 %s656, %s660
          %s662 = smul.addr %s661, 128
          %s663 = scalar_lea.hbm %s4, %s662
          %s664 = sshll.u32 %s652, 4
          %s665 = int_to_ptr.vmem [resolvable:$true] %s664
          %670 = dma.vmem_to_hbm [thread:$0]  %s665, 1024, %s663, %s649, 256, 256, 16
        $region48: #{tpu_custom_call.1} parent=35 // pred_fallthru
          _
      $region36: #{tpu_custom_call.1} parent=5 // pred_fallthru
        _
      %p671 = scmp.le.s32.totalorder 2, %s17
      // Predicated region
      $region49: #{tpu_custom_call.1} parent=5 // pred_check
        %p672 = pneg %p671
      $region50: #{tpu_custom_call.1} parent=5 // pred_check_branch
        %674 = sbr.rel (%p672) target = $region52
      $region51: #{tpu_custom_call.1} parent=5 // pred_region
        %s675 = ssub.s32 %s17, 2
        // Predicated region
        $region53: #{tpu_custom_call.1} parent=51 // pred_check
          %p676 = pneg %p151
        $region54: #{tpu_custom_call.1} parent=51 // pred_check_branch
          %678 = sbr.rel (%p676) target = $region56
        $region55: #{tpu_custom_call.1} parent=51 // pred_region
          %s679 = sand.u32 %s136, 1
          %s680 = scalar_lea.sflag [#allocation4], %s679
          %s681 = sand.u32 %s136, 1
          %s682 = smul.addr %s681, 64
          %s683 = scalar_lea.vmem [#allocation7], %s682
          %684 = dma.done %s680, 1024
        $region56: #{tpu_custom_call.1} parent=51 // pred_fallthru
          _
      $region52: #{tpu_custom_call.1} parent=5 // pred_fallthru
        _
    $region6: #{tpu_custom_call.1} parent=1 // loop_footer
      %s21 = sadd.s32 1, %s17
    $region7: #{tpu_custom_call.1} parent=1 // loop_footer_branch
      %16 = sbr.rel target = $region3
    $region8: #{tpu_custom_call.1} parent=1 // loop_exit
      _
    %685 = vsyncpa [#allocation3], 1
    %s686 = scalar_lea.sflag [#allocation3], 1
    %687 = vsyncpa %s686, 1
    %688 = vsyncpa [#allocation4], 1
    %s689 = scalar_lea.sflag [#allocation4], 1
    %690 = vsyncpa %s689, 1
    %691 = vsyncpa [#allocation5], 1
    %s692 = scalar_lea.sflag [#allocation5], 1
    %693 = vsyncpa %s692, 1

</llo_original>
